<compile_context>
chip_gen: v7x
topology: tpu7x:2x2x1
jax: 0.10.0
libtpu: 0.0.40
codegen_flags: <defaults>
</compile_context>

<pallas_src>
import jax
import jax.numpy as jnp
from jax.experimental import pallas as pl
from jax.experimental.pallas import tpu as pltpu

NUM_CLASSES = 5
ALPHA = 200.0
SPAN_RATIO = 1.5
LARGE = 1.0e7

# stat-lane layout of the per-batch (8, 128) output slab
_L_CNT_GT, _L_CNT_PR, _L_ZSUM_GT, _L_ZSUM_PR, _L_NLL = 0, 1, 2, 3, 4
_L_XMIN_GT, _L_YMIN_GT, _L_XMIN_PR, _L_YMIN_PR = 5, 6, 7, 8
_N_SUM_LANES = 5    # lanes [0, 5) accumulate with +
_N_MIN_LANES = 9    # lanes [5, 9) accumulate with min


def _bridge_stats_kernel(logits_ref, labels_ref, points_ref, out_ref):
    """One (batch element, N tile) grid step.

    Block shapes:
      logits_ref : (1, C, Nt)  any float dtype (cast to f32 after the load)
      labels_ref : (1, 1, Nt)  int32  (pad points carry label NUM_CLASSES)
      points_ref : (1, 3, Nt)  any float dtype
      out_ref    : (1, 8, 128) f32, resident across the trailing N-tile axis.
    """
    n_idx = pl.program_id(1)
    lane = jax.lax.broadcasted_iota(jnp.int32, (8, 128), 1)

    # ---- init the resident accumulator slab on the first N tile ------------
    @pl.when(n_idx == 0)
    def _init():
        is_min_lane = jnp.logical_and(lane >= _N_SUM_LANES, lane < _N_MIN_LANES)
        out_ref[0] = jnp.where(is_min_lane, jnp.inf, 0.0).astype(jnp.float32)

    logits = logits_ref[0].astype(jnp.float32)      # (C, Nt)
    labels = labels_ref[0]                          # (1, Nt) int32
    pts = points_ref[0].astype(jnp.float32)         # (3, Nt)
    C, Nt = logits.shape

    px = pts[0:1, :]
    py = pts[1:2, :]
    pz = pts[2:3, :]

    # loop-invariant iotas built exactly once per grid step
    cls5 = jax.lax.broadcasted_iota(jnp.int32, (C, Nt), 0)
    cls8 = jax.lax.broadcasted_iota(jnp.int32, (8, Nt), 0)

    # argmax over classes (first maximal index, ties -> lowest class id),
    # computed on the same in-kernel f32 cast that feeds the NLL.
    max_val = jnp.max(logits, axis=0, keepdims=True)                     # (1, Nt)
    preds = jnp.min(jnp.where(logits == max_val, cls5, C),
                    axis=0, keepdims=True)                               # (1, Nt) int32

    # boolean one-hot masks, computed once and reused everywhere (rows 5..7
    # are always False and cost nothing inside the same 8-sublane vregs).
    m_gt = cls8 == labels                                                # (8, Nt)
    m_pr = cls8 == preds                                                 # (8, Nt)

    # per-point NLL (log-softmax over the class axis); exp/log ride the EUP slot
    lse = jnp.log(jnp.sum(jnp.exp(logits - max_val), axis=0, keepdims=True)) + max_val
    sel = jnp.sum(jnp.where(cls5 == labels, logits, 0.0),
                  axis=0, keepdims=True)                                 # (1, Nt)
    nll = lse - sel                                                      # (1, Nt)

    # 9 batched (8, Nt) -> (8, 1) lane reductions.  jnp.where(mask, v, fill)
    # is a single vsel and matches v*mask + (1-mask)*fill exactly.  The
    # compute_span max(-x_valid) terms are NOT reduced here: they equal
    # -min(x_valid) exactly and are derived in the epilogue.
    cnt_gt = jnp.sum(jnp.where(m_gt, 1.0, 0.0), axis=1, keepdims=True)
    cnt_pr = jnp.sum(jnp.where(m_pr, 1.0, 0.0), axis=1, keepdims=True)
    zs_gt = jnp.sum(jnp.where(m_gt, pz, 0.0), axis=1, keepdims=True)
    zs_pr = jnp.sum(jnp.where(m_pr, pz, 0.0), axis=1, keepdims=True)
    nll_s = jnp.sum(jnp.where(m_gt, nll, 0.0), axis=1, keepdims=True)
    mn_xg = jnp.min(jnp.where(m_gt, px, LARGE), axis=1, keepdims=True)
    mn_yg = jnp.min(jnp.where(m_gt, py, LARGE), axis=1, keepdims=True)
    mn_xp = jnp.min(jnp.where(m_pr, px, LARGE), axis=1, keepdims=True)
    mn_yp = jnp.min(jnp.where(m_pr, py, LARGE), axis=1, keepdims=True)

    # fold the 9 (8,1) columns straight into the resident accumulator
    acc = out_ref[0]
    for col, j in ((cnt_gt, _L_CNT_GT), (cnt_pr, _L_CNT_PR),
                   (zs_gt, _L_ZSUM_GT), (zs_pr, _L_ZSUM_PR), (nll_s, _L_NLL)):
        acc = acc + jnp.where(lane == j, col, 0.0)
    for col, j in ((mn_xg, _L_XMIN_GT), (mn_yg, _L_YMIN_GT),
                   (mn_xp, _L_XMIN_PR), (mn_yp, _L_YMIN_PR)):
        acc = jnp.minimum(acc, jnp.where(lane == j, col, jnp.inf))
    out_ref[0] = acc


def _round_up(x, m):
    return ((x + m - 1) // m) * m


def bridge_structure_loss(outputs, labels, points, *,
                          max_n_tile=4096, points_channel_first=False):
    """outputs: (B, 5, N) float logits (f32 or bf16), labels: (B, N) int,
    points: (B, N, 3) float — or (B, 3, N) if points_channel_first=True."""
    B, C, N = outputs.shape
    assert C == NUM_CLASSES
    labels3 = labels.astype(jnp.int32).reshape(B, 1, N)
    if points_channel_first:
        points_t = points                                  # (B, 3, N), no extra HBM pass
    else:
        # TODO(synk): produce points channel-first upstream (or as x/y/z planes)
        # to avoid this full extra HBM read+write transpose outside the kernel.
        points_t = jnp.transpose(points, (0, 2, 1))        # (B, 3, N)

    # Always tile N: pick a 128-aligned tile, pad N up to a whole number of
    # tiles.  Pad points get label NUM_CLASSES / zero logits / zero coords and
    # therefore contribute nothing to the class-0..4 GT statistics and only to
    # the (unused) class-0 prediction statistics.
    nt_cap = max(128, (max_n_tile // 128) * 128)
    num_tiles = (N + nt_cap - 1) // nt_cap
    nt = _round_up((N + num_tiles - 1) // num_tiles, 128)
    n_pad = nt * num_tiles
    if n_pad != N:
        pad = n_pad - N
        outputs = jnp.pad(outputs, ((0, 0), (0, 0), (0, pad)))
        labels3 = jnp.pad(labels3, ((0, 0), (0, 0), (0, pad)),
                          constant_values=NUM_CLASSES)
        points_t = jnp.pad(points_t, ((0, 0), (0, 0), (0, pad)))

    grid = (B, num_tiles)   # batch "parallel" (megacore), N reduction last
    stats = pl.pallas_call(
        _bridge_stats_kernel,
        out_shape=jax.ShapeDtypeStruct((B, 8, 128), jnp.float32),
        grid_spec=pltpu.PrefetchScalarGridSpec(
            num_scalar_prefetch=0,
            grid=grid,
            in_specs=[
                pl.BlockSpec((1, C, nt), lambda b, n: (b, 0, n)),
                pl.BlockSpec((1, 1, nt), lambda b, n: (b, 0, n)),
                pl.BlockSpec((1, 3, nt), lambda b, n: (b, 0, n)),
            ],
            out_specs=pl.BlockSpec((1, 8, 128), lambda b, n: (b, 0, 0)),
        ),
        compiler_params=pltpu.CompilerParams(
            dimension_semantics=("parallel", "arbitrary")),
    )(outputs, labels3, points_t)

    # ---- tiny O(B*C) epilogue in plain JAX ---------------------------------
    K = NUM_CLASSES
    cnt_gt = stats[:, :K, _L_CNT_GT]
    cnt_pr = stats[:, :K, _L_CNT_PR]
    zsum_gt = stats[:, :K, _L_ZSUM_GT]
    zsum_pr = stats[:, :K, _L_ZSUM_PR]
    nll_sum = stats[:, :K, _L_NLL]
    xmin_gt = stats[:, :K, _L_XMIN_GT]
    ymin_gt = stats[:, :K, _L_YMIN_GT]
    xmin_pr = stats[:, :K, _L_XMIN_PR]
    ymin_pr = stats[:, :K, _L_YMIN_PR]

    gt_exist = cnt_gt > 0.0
    pr_exist = cnt_pr > 0.0

    weights = jnp.ones((B, K), jnp.float32)
    # penalty for predicting a class that does not exist in the ground truth
    for c in (1, 2, 3, 4):
        miss = jnp.logical_and(jnp.logical_not(gt_exist[:, c]), pr_exist[:, c])
        weights = weights.at[:, c].add(ALPHA * miss.astype(jnp.float32))

    # compute_span: under the module's own masking max(-x_valid) == -min(x_valid)
    # exactly, so only the mins are reduced in-kernel and the max terms are
    # derived here (the span then follows the PyTorch formula verbatim).
    xmax_gt, ymax_gt = -xmin_gt, -ymin_gt
    xmax_pr, ymax_pr = -xmin_pr, -ymin_pr
    gt_span = jnp.stack([-xmax_gt - xmin_gt, -ymax_gt - ymin_gt], axis=-1)   # (B, K, 2)
    pr_span = jnp.stack([-xmax_pr - xmin_pr, -ymax_pr - ymin_pr], axis=-1)
    for c in (2, 4):
        valid = jnp.logical_and(pr_span[:, c] < SPAN_RATIO * gt_span[:, c],
                                pr_span[:, c] > (1.0 / SPAN_RATIO) * gt_span[:, c])
        viol = jnp.logical_and(jnp.logical_not(valid), gt_exist[:, c][:, None])
        weights = weights.at[:, c].add(
            ALPHA * jnp.any(viol, axis=1).astype(jnp.float32))

    # vertical (z) ordering relations
    gt_z = zsum_gt / jnp.maximum(cnt_gt, 1e-7)
    pr_z = zsum_pr / jnp.maximum(cnt_pr, 1e-7)

    def below_viol(lo, hi):      # lo should be below hi
        return jnp.logical_and(gt_z[:, lo] < gt_z[:, hi],
                               pr_z[:, lo] >= pr_z[:, hi]).astype(jnp.float32)

    m12 = below_viol(1, 2)       # abutment below girder
    m13 = below_viol(1, 3)       # abutment below deck
    m34 = below_viol(3, 4)       # deck below parapet
    m32 = jnp.logical_and(gt_z[:, 3] > gt_z[:, 2],
                          pr_z[:, 3] <= pr_z[:, 2]).astype(jnp.float32)  # deck above girder
    weights = weights.at[:, 1].add(ALPHA * (m12 + m13))
    weights = weights.at[:, 2].add(ALPHA * (m12 + m32))
    weights = weights.at[:, 3].add(ALPHA * (m13 + m32 + m34))
    weights = weights.at[:, 4].add(ALPHA * m34)

    # weighted cross-entropy, identical to F.cross_entropy(..., weight=w.mean(0))
    w_mean = jnp.mean(weights, axis=0)
    num = jnp.sum(w_mean * jnp.sum(nll_sum, axis=0))
    den = jnp.sum(w_mean * jnp.sum(cnt_gt, axis=0))
    return num / den


def _reference_loss(outputs, labels, points, alpha=ALPHA, span_ratio=SPAN_RATIO):
    """Pure-JAX mirror of the PyTorch forward, used only for verification."""
    out = jnp.transpose(outputs.astype(jnp.float32), (0, 2, 1))   # (B, N, C)
    points = points.astype(jnp.float32)
    B, N, C = out.shape
    preds = jnp.argmax(out, axis=-1)
    weights = jnp.ones((B, C), jnp.float32)
    class_ids = (1, 2, 3, 4)
    gt_exist = {c: jnp.any(labels == c, axis=1) for c in class_ids}
    pr_exist = {c: jnp.any(preds == c, axis=1) for c in class_ids}
    for c in class_ids:
        m = jnp.logical_and(~gt_exist[c], pr_exist[c]).astype(jnp.float32)
        weights = weights.at[:, c].add(alpha * m)

    def compute_span(pts, mask):
        mf = mask.astype(jnp.float32)
        mp = pts * mf[..., None]
        x_valid = mp[..., 0] + (1.0 - mf) * LARGE
        y_valid = mp[..., 1] + (1.0 - mf) * LARGE
        x_span = -jnp.max(-x_valid, axis=1) - jnp.min(x_valid, axis=1)
        y_span = -jnp.max(-y_valid, axis=1) - jnp.min(y_valid, axis=1)
        return jnp.stack([x_span, y_span], axis=1)

    for c in (2, 4):
        gt_span = compute_span(points, labels == c)
        pr_span = compute_span(points, preds == c)
        valid = (pr_span < span_ratio * gt_span) & (pr_span > (1.0 / span_ratio) * gt_span)
        violation = (~valid) & gt_exist[c][:, None]
        weights = weights.at[:, c].add(
            alpha * jnp.any(violation, axis=1).astype(jnp.float32))

    def mean_z(mask):
        mf = mask.astype(jnp.float32)
        return jnp.sum(points[..., 2] * mf, axis=1) / jnp.maximum(jnp.sum(mf, axis=1), 1e-7)

    gt_z = jnp.stack([mean_z(labels == c) for c in class_ids], axis=1)
    pr_z = jnp.stack([mean_z(preds == c) for c in class_ids], axis=1)

    for lo, hi in ((1, 2), (1, 3), (3, 4)):      # 'below' relations
        m = ((gt_z[:, lo - 1] < gt_z[:, hi - 1]) &
             (pr_z[:, lo - 1] >= pr_z[:, hi - 1])).astype(jnp.float32)
        weights = weights.at[:, lo].add(alpha * m)
        weights = weights.at[:, hi].add(alpha * m)
    m = ((gt_z[:, 2] > gt_z[:, 1]) & (pr_z[:, 2] <= pr_z[:, 1])).astype(jnp.float32)
    weights = weights.at[:, 3].add(alpha * m)    # deck 'above' girder
    weights = weights.at[:, 2].add(alpha * m)

    w = jnp.mean(weights, axis=0)
    logits = out.reshape(-1, C)
    tgt = labels.reshape(-1)
    nll = jax.nn.logsumexp(logits, axis=-1) - \
        jnp.take_along_axis(logits, tgt[:, None], axis=1)[:, 0]
    wt = w[tgt]
    return jnp.sum(wt * nll) / jnp.sum(wt)


if __name__ == "__main__":
    key = jax.random.PRNGKey(0)
    k1, k2, k3, k4, k5, k6 = jax.random.split(key, 6)

    # test 1: single N tile, f32 inputs
    B, C, N = 2, NUM_CLASSES, 128
    outputs = jax.random.normal(k1, (B, C, N), dtype=jnp.float32)
    labels = jax.random.randint(k2, (B, N), 0, NUM_CLASSES, dtype=jnp.int32)
    points = jax.random.normal(k3, (B, N, 3), dtype=jnp.float32)

    loss = jax.block_until_ready(bridge_structure_loss(outputs, labels, points))
    ref = jax.block_until_ready(_reference_loss(outputs, labels, points))
    assert jnp.isfinite(loss), "kernel loss is not finite"
    assert jnp.allclose(loss, ref, rtol=1e-4, atol=1e-4), (loss, ref)

    # test 2: N not a multiple of 128 (exercises wrapper-side padding), the
    # multi-tile N accumulator path, a >1 parallel batch grid, bf16 inputs.
    B2, N2 = 3, 300
    outputs2 = jax.random.normal(k4, (B2, C, N2), dtype=jnp.bfloat16)
    labels2 = jax.random.randint(k5, (B2, N2), 0, NUM_CLASSES, dtype=jnp.int32)
    points2 = jax.random.normal(k6, (B2, N2, 3), dtype=jnp.bfloat16)

    loss2 = jax.block_until_ready(
        bridge_structure_loss(outputs2, labels2, points2, max_n_tile=128))
    ref2 = jax.block_until_ready(_reference_loss(outputs2, labels2, points2))
    assert jnp.isfinite(loss2), "tiled kernel loss is not finite"
    assert jnp.allclose(loss2, ref2, rtol=1e-3, atol=1e-3), (loss2, ref2)

    print("KERNEL_OK")
</pallas_src>

<mosaic_0001>
module attributes {stable_mosaic.version = 11 : i64} {
  func.func @_bridge_stats_kernel(%arg0: i32, %arg1: i32, %arg2: memref<1x5x128xf32, #tpu.memory_space<vmem>>, %arg3: memref<1x1x128xi32, #tpu.memory_space<vmem>>, %arg4: memref<1x3x128xf32, #tpu.memory_space<vmem>>, %arg5: memref<1x8x128xf32, #tpu.memory_space<vmem>>) attributes {dimension_semantics = [#tpu.dimension_semantics<parallel>, #tpu.dimension_semantics<arbitrary>], iteration_bounds = array<i64: 2, 1>, scalar_prefetch = 0 : i64, scratch_operands = 0 : i64, tpu.core_type = #tpu.core_type<tc>, window_params = [{transform_indices = @transform_0, window_bounds = array<i64: 1, 5, 128>}, {transform_indices = @transform_1, window_bounds = array<i64: 1, 1, 128>}, {transform_indices = @transform_2, window_bounds = array<i64: 1, 3, 128>}, {transform_indices = @transform_3, window_bounds = array<i64: 1, 8, 128>}]} {
    %0 = tpu.iota {dimensions = array<i32: 1>} : vector<8x128xi32>
    %c0_i32 = arith.constant 0 : i32
    %1 = arith.cmpi eq, %arg1, %c0_i32 : i32
    %2 = arith.extui %1 : i1 to i32
    %c0_i32_0 = arith.constant 0 : i32
    %3 = arith.cmpi ne, %2, %c0_i32_0 : i32
    scf.if %3 {
      %c5_i32_50 = arith.constant 5 : i32
      %161 = vector.broadcast %c5_i32_50 : i32 to vector<8x128xi32>
      %162 = arith.cmpi sge, %0, %161 : vector<8x128xi32>
      %c9_i32 = arith.constant 9 : i32
      %163 = vector.broadcast %c9_i32 : i32 to vector<8x128xi32>
      %164 = arith.cmpi slt, %0, %163 : vector<8x128xi32>
      %165 = arith.andi %162, %164 : vector<8x128xi1>
      %cst_51 = arith.constant 0x7F800000 : f32
      %cst_52 = arith.constant 0.000000e+00 : f32
      %166 = vector.broadcast %cst_51 : f32 to vector<8x128xf32>
      %167 = vector.broadcast %cst_52 : f32 to vector<8x128xf32>
      %168 = arith.select %165, %166, %167 : vector<8x128xi1>, vector<8x128xf32>
      %c0_53 = arith.constant 0 : index
      %c0_54 = arith.constant 0 : index
      %c0_55 = arith.constant 0 : index
      %169 = vector.load %arg5[%c0_53, %c0_54, %c0_55] : memref<1x8x128xf32, #tpu.memory_space<vmem>>, vector<1x8x128xf32>
      %170 = vector.shape_cast %169 : vector<1x8x128xf32> to vector<8x128xf32>
      %171 = vector.shape_cast %168 : vector<8x128xf32> to vector<1x8x128xf32>
      tpu.vector_store %arg5[%c0_53, %c0_54, %c0_55], %171 {strides = array<i32>} : memref<1x8x128xf32, #tpu.memory_space<vmem>>, vector<1x8x128xf32>,
    } else {
    }
    %c0 = arith.constant 0 : index
    %c0_1 = arith.constant 0 : index
    %c0_2 = arith.constant 0 : index
    %4 = vector.load %arg2[%c0, %c0_1, %c0_2] : memref<1x5x128xf32, #tpu.memory_space<vmem>>, vector<1x5x128xf32>
    %5 = vector.shape_cast %4 : vector<1x5x128xf32> to vector<5x128xf32>
    %c0_3 = arith.constant 0 : index
    %c0_4 = arith.constant 0 : index
    %c0_5 = arith.constant 0 : index
    %6 = vector.load %arg3[%c0_3, %c0_4, %c0_5] : memref<1x1x128xi32, #tpu.memory_space<vmem>>, vector<1x1x128xi32>
    %7 = vector.shape_cast %6 : vector<1x1x128xi32> to vector<1x128xi32>
    %c0_6 = arith.constant 0 : index
    %c0_7 = arith.constant 0 : index
    %c0_8 = arith.constant 0 : index
    %8 = vector.load %arg4[%c0_6, %c0_7, %c0_8] : memref<1x3x128xf32, #tpu.memory_space<vmem>>, vector<1x3x128xf32>
    %9 = vector.shape_cast %8 : vector<1x3x128xf32> to vector<3x128xf32>
    %10 = vector.extract_strided_slice %9 {offsets = [0, 0], sizes = [1, 128], strides = [1, 1]} : vector<3x128xf32> to vector<1x128xf32>
    %11 = vector.extract_strided_slice %9 {offsets = [1, 0], sizes = [1, 128], strides = [1, 1]} : vector<3x128xf32> to vector<1x128xf32>
    %12 = vector.extract_strided_slice %9 {offsets = [2, 0], sizes = [1, 128], strides = [1, 1]} : vector<3x128xf32> to vector<1x128xf32>
    %13 = tpu.iota {dimensions = array<i32: 0>} : vector<5x128xi32>
    %14 = tpu.iota {dimensions = array<i32: 0>} : vector<8x128xi32>
    %cst = arith.constant dense<0xFF800000> : vector<128xf32>
    %15 = vector.multi_reduction <maximumf>, %5, %cst [0] : vector<5x128xf32> to vector<128xf32>
    %16 = vector.shape_cast %15 : vector<128xf32> to vector<1x128xf32>
    %17 = vector.broadcast %16 : vector<1x128xf32> to vector<5x128xf32>
    %18 = arith.cmpf oeq, %5, %17 : vector<5x128xf32>
    %c5_i32 = arith.constant 5 : i32
    %19 = vector.broadcast %c5_i32 : i32 to vector<5x128xi32>
    %20 = arith.select %18, %13, %19 : vector<5x128xi1>, vector<5x128xi32>
    %cst_9 = arith.constant dense<2147483647> : vector<128xi32>
    %21 = vector.multi_reduction <minsi>, %20, %cst_9 [0] : vector<5x128xi32> to vector<128xi32>
    %22 = vector.shape_cast %21 : vector<128xi32> to vector<1x128xi32>
    %23 = vector.broadcast %7 : vector<1x128xi32> to vector<8x128xi32>
    %24 = arith.cmpi eq, %14, %23 : vector<8x128xi32>
    %25 = vector.broadcast %22 : vector<1x128xi32> to vector<8x128xi32>
    %26 = arith.cmpi eq, %14, %25 : vector<8x128xi32>
    %27 = vector.broadcast %16 : vector<1x128xf32> to vector<5x128xf32>
    %28 = arith.subf %5, %27 : vector<5x128xf32>
    %29 = math.exp %28 : vector<5x128xf32>
    %cst_10 = arith.constant dense<0.000000e+00> : vector<128xf32>
    %30 = vector.multi_reduction <add>, %29, %cst_10 [0] : vector<5x128xf32> to vector<128xf32>
    %31 = vector.shape_cast %30 : vector<128xf32> to vector<1x128xf32>
    %32 = math.log %31 : vector<1x128xf32>
    %33 = arith.addf %32, %16 : vector<1x128xf32>
    %34 = vector.broadcast %7 : vector<1x128xi32> to vector<5x128xi32>
    %35 = arith.cmpi eq, %13, %34 : vector<5x128xi32>
    %cst_11 = arith.constant 0.000000e+00 : f32
    %36 = vector.broadcast %cst_11 : f32 to vector<5x128xf32>
    %37 = arith.select %35, %5, %36 : vector<5x128xi1>, vector<5x128xf32>
    %cst_12 = arith.constant dense<0.000000e+00> : vector<128xf32>
    %38 = vector.multi_reduction <add>, %37, %cst_12 [0] : vector<5x128xf32> to vector<128xf32>
    %39 = vector.shape_cast %38 : vector<128xf32> to vector<1x128xf32>
    %40 = arith.subf %33, %39 : vector<1x128xf32>
    %cst_13 = arith.constant 1.000000e+00 : f32
    %cst_14 = arith.constant 0.000000e+00 : f32
    %41 = vector.broadcast %cst_13 : f32 to vector<8x128xf32>
    %42 = vector.broadcast %cst_14 : f32 to vector<8x128xf32>
    %43 = arith.select %24, %41, %42 : vector<8x128xi1>, vector<8x128xf32>
    %cst_15 = arith.constant dense<0.000000e+00> : vector<8xf32>
    %44 = vector.multi_reduction <add>, %43, %cst_15 [1] : vector<8x128xf32> to vector<8xf32>
    %45 = vector.shape_cast %44 : vector<8xf32> to vector<8x1xf32>
    %cst_16 = arith.constant 1.000000e+00 : f32
    %cst_17 = arith.constant 0.000000e+00 : f32
    %46 = vector.broadcast %cst_16 : f32 to vector<8x128xf32>
    %47 = vector.broadcast %cst_17 : f32 to vector<8x128xf32>
    %48 = arith.select %26, %46, %47 : vector<8x128xi1>, vector<8x128xf32>
    %cst_18 = arith.constant dense<0.000000e+00> : vector<8xf32>
    %49 = vector.multi_reduction <add>, %48, %cst_18 [1] : vector<8x128xf32> to vector<8xf32>
    %50 = vector.shape_cast %49 : vector<8xf32> to vector<8x1xf32>
    %cst_19 = arith.constant 0.000000e+00 : f32
    %51 = vector.shape_cast %12 : vector<1x128xf32> to vector<1x128xf32>
    %52 = vector.broadcast %51 : vector<1x128xf32> to vector<8x128xf32>
    %53 = vector.broadcast %cst_19 : f32 to vector<8x128xf32>
    %54 = arith.select %24, %52, %53 : vector<8x128xi1>, vector<8x128xf32>
    %cst_20 = arith.constant dense<0.000000e+00> : vector<8xf32>
    %55 = vector.multi_reduction <add>, %54, %cst_20 [1] : vector<8x128xf32> to vector<8xf32>
    %56 = vector.shape_cast %55 : vector<8xf32> to vector<8x1xf32>
    %cst_21 = arith.constant 0.000000e+00 : f32
    %57 = vector.shape_cast %12 : vector<1x128xf32> to vector<1x128xf32>
    %58 = vector.broadcast %57 : vector<1x128xf32> to vector<8x128xf32>
    %59 = vector.broadcast %cst_21 : f32 to vector<8x128xf32>
    %60 = arith.select %26, %58, %59 : vector<8x128xi1>, vector<8x128xf32>
    %cst_22 = arith.constant dense<0.000000e+00> : vector<8xf32>
    %61 = vector.multi_reduction <add>, %60, %cst_22 [1] : vector<8x128xf32> to vector<8xf32>
    %62 = vector.shape_cast %61 : vector<8xf32> to vector<8x1xf32>
    %cst_23 = arith.constant 0.000000e+00 : f32
    %63 = vector.shape_cast %40 : vector<1x128xf32> to vector<1x128xf32>
    %64 = vector.broadcast %63 : vector<1x128xf32> to vector<8x128xf32>
    %65 = vector.broadcast %cst_23 : f32 to vector<8x128xf32>
    %66 = arith.select %24, %64, %65 : vector<8x128xi1>, vector<8x128xf32>
    %cst_24 = arith.constant dense<0.000000e+00> : vector<8xf32>
    %67 = vector.multi_reduction <add>, %66, %cst_24 [1] : vector<8x128xf32> to vector<8xf32>
    %68 = vector.shape_cast %67 : vector<8xf32> to vector<8x1xf32>
    %cst_25 = arith.constant 1.000000e+07 : f32
    %69 = vector.shape_cast %10 : vector<1x128xf32> to vector<1x128xf32>
    %70 = vector.broadcast %69 : vector<1x128xf32> to vector<8x128xf32>
    %71 = vector.broadcast %cst_25 : f32 to vector<8x128xf32>
    %72 = arith.select %24, %70, %71 : vector<8x128xi1>, vector<8x128xf32>
    %cst_26 = arith.constant dense<0x7F800000> : vector<8xf32>
    %73 = vector.multi_reduction <minimumf>, %72, %cst_26 [1] : vector<8x128xf32> to vector<8xf32>
    %74 = vector.shape_cast %73 : vector<8xf32> to vector<8x1xf32>
    %cst_27 = arith.constant 1.000000e+07 : f32
    %75 = vector.shape_cast %11 : vector<1x128xf32> to vector<1x128xf32>
    %76 = vector.broadcast %75 : vector<1x128xf32> to vector<8x128xf32>
    %77 = vector.broadcast %cst_27 : f32 to vector<8x128xf32>
    %78 = arith.select %24, %76, %77 : vector<8x128xi1>, vector<8x128xf32>
    %cst_28 = arith.constant dense<0x7F800000> : vector<8xf32>
    %79 = vector.multi_reduction <minimumf>, %78, %cst_28 [1] : vector<8x128xf32> to vector<8xf32>
    %80 = vector.shape_cast %79 : vector<8xf32> to vector<8x1xf32>
    %cst_29 = arith.constant 1.000000e+07 : f32
    %81 = vector.shape_cast %10 : vector<1x128xf32> to vector<1x128xf32>
    %82 = vector.broadcast %81 : vector<1x128xf32> to vector<8x128xf32>
    %83 = vector.broadcast %cst_29 : f32 to vector<8x128xf32>
    %84 = arith.select %26, %82, %83 : vector<8x128xi1>, vector<8x128xf32>
    %cst_30 = arith.constant dense<0x7F800000> : vector<8xf32>
    %85 = vector.multi_reduction <minimumf>, %84, %cst_30 [1] : vector<8x128xf32> to vector<8xf32>
    %86 = vector.shape_cast %85 : vector<8xf32> to vector<8x1xf32>
    %cst_31 = arith.constant 1.000000e+07 : f32
    %87 = vector.shape_cast %11 : vector<1x128xf32> to vector<1x128xf32>
    %88 = vector.broadcast %87 : vector<1x128xf32> to vector<8x128xf32>
    %89 = vector.broadcast %cst_31 : f32 to vector<8x128xf32>
    %90 = arith.select %26, %88, %89 : vector<8x128xi1>, vector<8x128xf32>
    %cst_32 = arith.constant dense<0x7F800000> : vector<8xf32>
    %91 = vector.multi_reduction <minimumf>, %90, %cst_32 [1] : vector<8x128xf32> to vector<8xf32>
    %92 = vector.shape_cast %91 : vector<8xf32> to vector<8x1xf32>
    %c0_33 = arith.constant 0 : index
    %c0_34 = arith.constant 0 : index
    %c0_35 = arith.constant 0 : index
    %93 = vector.load %arg5[%c0_33, %c0_34, %c0_35] : memref<1x8x128xf32, #tpu.memory_space<vmem>>, vector<1x8x128xf32>
    %94 = vector.shape_cast %93 : vector<1x8x128xf32> to vector<8x128xf32>
    %c0_i32_36 = arith.constant 0 : i32
    %95 = vector.broadcast %c0_i32_36 : i32 to vector<8x128xi32>
    %96 = arith.cmpi eq, %0, %95 : vector<8x128xi32>
    %cst_37 = arith.constant 0.000000e+00 : f32
    %97 = vector.shape_cast %45 : vector<8x1xf32> to vector<8x1xf32>
    %98 = vector.broadcast %97 : vector<8x1xf32> to vector<8x128xf32>
    %99 = vector.broadcast %cst_37 : f32 to vector<8x128xf32>
    %100 = arith.select %96, %98, %99 : vector<8x128xi1>, vector<8x128xf32>
    %101 = arith.addf %94, %100 : vector<8x128xf32>
    %c1_i32 = arith.constant 1 : i32
    %102 = vector.broadcast %c1_i32 : i32 to vector<8x128xi32>
    %103 = arith.cmpi eq, %0, %102 : vector<8x128xi32>
    %cst_38 = arith.constant 0.000000e+00 : f32
    %104 = vector.shape_cast %50 : vector<8x1xf32> to vector<8x1xf32>
    %105 = vector.broadcast %104 : vector<8x1xf32> to vector<8x128xf32>
    %106 = vector.broadcast %cst_38 : f32 to vector<8x128xf32>
    %107 = arith.select %103, %105, %106 : vector<8x128xi1>, vector<8x128xf32>
    %108 = arith.addf %101, %107 : vector<8x128xf32>
    %c2_i32 = arith.constant 2 : i32
    %109 = vector.broadcast %c2_i32 : i32 to vector<8x128xi32>
    %110 = arith.cmpi eq, %0, %109 : vector<8x128xi32>
    %cst_39 = arith.constant 0.000000e+00 : f32
    %111 = vector.shape_cast %56 : vector<8x1xf32> to vector<8x1xf32>
    %112 = vector.broadcast %111 : vector<8x1xf32> to vector<8x128xf32>
    %113 = vector.broadcast %cst_39 : f32 to vector<8x128xf32>
    %114 = arith.select %110, %112, %113 : vector<8x128xi1>, vector<8x128xf32>
    %115 = arith.addf %108, %114 : vector<8x128xf32>
    %c3_i32 = arith.constant 3 : i32
    %116 = vector.broadcast %c3_i32 : i32 to vector<8x128xi32>
    %117 = arith.cmpi eq, %0, %116 : vector<8x128xi32>
    %cst_40 = arith.constant 0.000000e+00 : f32
    %118 = vector.shape_cast %62 : vector<8x1xf32> to vector<8x1xf32>
    %119 = vector.broadcast %118 : vector<8x1xf32> to vector<8x128xf32>
    %120 = vector.broadcast %cst_40 : f32 to vector<8x128xf32>
    %121 = arith.select %117, %119, %120 : vector<8x128xi1>, vector<8x128xf32>
    %122 = arith.addf %115, %121 : vector<8x128xf32>
    %c4_i32 = arith.constant 4 : i32
    %123 = vector.broadcast %c4_i32 : i32 to vector<8x128xi32>
    %124 = arith.cmpi eq, %0, %123 : vector<8x128xi32>
    %cst_41 = arith.constant 0.000000e+00 : f32
    %125 = vector.shape_cast %68 : vector<8x1xf32> to vector<8x1xf32>
    %126 = vector.broadcast %125 : vector<8x1xf32> to vector<8x128xf32>
    %127 = vector.broadcast %cst_41 : f32 to vector<8x128xf32>
    %128 = arith.select %124, %126, %127 : vector<8x128xi1>, vector<8x128xf32>
    %129 = arith.addf %122, %128 : vector<8x128xf32>
    %c5_i32_42 = arith.constant 5 : i32
    %130 = vector.broadcast %c5_i32_42 : i32 to vector<8x128xi32>
    %131 = arith.cmpi eq, %0, %130 : vector<8x128xi32>
    %cst_43 = arith.constant 0x7F800000 : f32
    %132 = vector.shape_cast %74 : vector<8x1xf32> to vector<8x1xf32>
    %133 = vector.broadcast %132 : vector<8x1xf32> to vector<8x128xf32>
    %134 = vector.broadcast %cst_43 : f32 to vector<8x128xf32>
    %135 = arith.select %131, %133, %134 : vector<8x128xi1>, vector<8x128xf32>
    %136 = arith.minimumf %129, %135 : vector<8x128xf32>
    %c6_i32 = arith.constant 6 : i32
    %137 = vector.broadcast %c6_i32 : i32 to vector<8x128xi32>
    %138 = arith.cmpi eq, %0, %137 : vector<8x128xi32>
    %cst_44 = arith.constant 0x7F800000 : f32
    %139 = vector.shape_cast %80 : vector<8x1xf32> to vector<8x1xf32>
    %140 = vector.broadcast %139 : vector<8x1xf32> to vector<8x128xf32>
    %141 = vector.broadcast %cst_44 : f32 to vector<8x128xf32>
    %142 = arith.select %138, %140, %141 : vector<8x128xi1>, vector<8x128xf32>
    %143 = arith.minimumf %136, %142 : vector<8x128xf32>
    %c7_i32 = arith.constant 7 : i32
    %144 = vector.broadcast %c7_i32 : i32 to vector<8x128xi32>
    %145 = arith.cmpi eq, %0, %144 : vector<8x128xi32>
    %cst_45 = arith.constant 0x7F800000 : f32
    %146 = vector.shape_cast %86 : vector<8x1xf32> to vector<8x1xf32>
    %147 = vector.broadcast %146 : vector<8x1xf32> to vector<8x128xf32>
    %148 = vector.broadcast %cst_45 : f32 to vector<8x128xf32>
    %149 = arith.select %145, %147, %148 : vector<8x128xi1>, vector<8x128xf32>
    %150 = arith.minimumf %143, %149 : vector<8x128xf32>
    %c8_i32 = arith.constant 8 : i32
    %151 = vector.broadcast %c8_i32 : i32 to vector<8x128xi32>
    %152 = arith.cmpi eq, %0, %151 : vector<8x128xi32>
    %cst_46 = arith.constant 0x7F800000 : f32
    %153 = vector.shape_cast %92 : vector<8x1xf32> to vector<8x1xf32>
    %154 = vector.broadcast %153 : vector<8x1xf32> to vector<8x128xf32>
    %155 = vector.broadcast %cst_46 : f32 to vector<8x128xf32>
    %156 = arith.select %152, %154, %155 : vector<8x128xi1>, vector<8x128xf32>
    %157 = arith.minimumf %150, %156 : vector<8x128xf32>
    %c0_47 = arith.constant 0 : index
    %c0_48 = arith.constant 0 : index
    %c0_49 = arith.constant 0 : index
    %158 = vector.load %arg5[%c0_47, %c0_48, %c0_49] : memref<1x8x128xf32, #tpu.memory_space<vmem>>, vector<1x8x128xf32>
    %159 = vector.shape_cast %158 : vector<1x8x128xf32> to vector<8x128xf32>
    %160 = vector.shape_cast %157 : vector<8x128xf32> to vector<1x8x128xf32>
    tpu.vector_store %arg5[%c0_47, %c0_48, %c0_49], %160 {strides = array<i32>} : memref<1x8x128xf32, #tpu.memory_space<vmem>>, vector<1x8x128xf32>,
    return
  }
  func.func @transform_0(%arg0: i32, %arg1: i32) -> (i32, i32, i32) {
    %c0_i32 = arith.constant 0 : i32
    %c0_i32_0 = arith.constant 0 : i32
    return %arg0, %c0_i32, %arg1 : i32, i32, i32
  }
  func.func @transform_1(%arg0: i32, %arg1: i32) -> (i32, i32, i32) {
    %c0_i32 = arith.constant 0 : i32
    %c0_i32_0 = arith.constant 0 : i32
    return %arg0, %c0_i32, %arg1 : i32, i32, i32
  }
  func.func @transform_2(%arg0: i32, %arg1: i32) -> (i32, i32, i32) {
    %c0_i32 = arith.constant 0 : i32
    %c0_i32_0 = arith.constant 0 : i32
    return %arg0, %c0_i32, %arg1 : i32, i32, i32
  }
  func.func @transform_3(%arg0: i32, %arg1: i32) -> (i32, i32, i32) {
    %c0_i32 = arith.constant 0 : i32
    %c0_i32_0 = arith.constant 0 : i32
    %c0_i32_1 = arith.constant 0 : i32
    return %arg0, %c0_i32, %c0_i32_0 : i32, i32, i32
  }
}

</mosaic_0001>

<llo_original>
// kernel: tpu_custom_call.1
$region0: #{tpu_custom_call.1}
  #allocation0 [shape = 'u32[]', space=smem, size = 0x4, offset = 0x4, fixed_abs, tag = 'smem constant byte address 0x4 - core index']
  #allocation1 [shape = 'u32[144,128]{1,0:T(1,128)}', space=vmem, size = 0x12000, scoped, tag = 'internal scratch']
  %s0 = inlined_call_operand.vmem [shape: f32[2,5,128], index: 0, kind: input, shape index: {}]
  %s1 = inlined_call_operand.vmem [shape: s32[2,1,128], index: 1, kind: input, shape index: {}]
  %s2 = inlined_call_operand.vmem [shape: f32[2,3,128], index: 2, kind: input, shape index: {}]
  %s3 = inlined_call_operand.hbm [shape: f32[2,8,128], index: 3, kind: output, shape index: {}]
  %s4 = sld [smem:[#allocation0]]
  $region49: #{tpu_custom_call.1} parent=0
    _
  %s6 = ssub.s32 1, %s4
  %s7 = scalar_select 0, %s6, %s4
  $region1: #{tpu_custom_call.1} parent=0
    #allocation2 [shape = 'u8[8192]{0}', space=vmem, size = 0x2000, scoped, tag = 'output window, operand 0']
    #allocation3 [shape = 's32[2]{0}', space=sflag, size = 0x8, scoped, tag = 'scoped memory for tpu_custom_call.1']
    %8 = vsyncpa [#allocation3], 0
    %s9 = scalar_lea.sflag [#allocation3], 1
    %10 = vsyncpa %s9, 0
    loop: start=0, step=1, limit=4
    $region2: #{tpu_custom_call.1} parent=1 // loop_pre_header
      _
    $region3: #{tpu_custom_call.1} parent=1 // loop_header
      %s12 = sphi 0, %s16
      %p13 = scmp.ge.s32.totalorder %s12, 4
      %s19 = sphi 0, %s31
      %s20 = sphi 0, %s27
      %s21 = sphi 0, %s19
      %s22 = sphi 0, %s20
      %s23 = sphi 0, %s21
      %s24 = sphi 0, %s22
      %s36 = sphi 0, %s38
      %s39 = sphi 0, %s36
      %s40 = sphi 0, %s39
      %s56 = sphi 0, %s40
      %s64 = sphi 0, %s66
      %s67 = sphi 0, %s64
      %s68 = sphi 0, %s67
      %s84 = sphi 0, %s68
      %s92 = sphi 0, %s94
      %s95 = sphi 0, %s92
      %s96 = sphi 0, %s95
      %s112 = sphi 0, %s96
      %s118 = sphi 0, %s120
      %s121 = sphi 0, %s118
      %s122 = sphi 0, %s121
      %s138 = sphi 0, %s122
    $region4: #{tpu_custom_call.1} parent=1 // loop_header_branch
      %15 = sbr.rel (%p13) target = $region8
    $region5: #{tpu_custom_call.1} parent=1 // loop_body
      %s17 = ssub.s32 %s12, 1
      %s18 = ssub.s32 %s12, 2
      %s25 = sadd.s32 1, %s20
      %p26 = scmp.ge.s32.totalorder %s25, 1
      %s27 = scalar_select %p26, 0, %s25
      %s28 = sadd.s32 1, %s19
      %s29 = scalar_select %p26, %s28, %s19
      %p30 = scmp.ge.s32.totalorder %s29, 2
      %s31 = scalar_select %p30, 0, %s29
      %s32 = ssub.s32 %s19, %s31
      %s33 = ssub.s32 %s20, %s27
      %s34 = sor.u32 %s32, %s33
      %p35 = scmp.eq.s32.totalorder %s34, 0
      %s37 = sadd.s32 %s36, 1
      %s38 = scalar_select %p35, %s36, %s37
      %p41 = pneg %p35
      %p42 = scmp.eq.s32.totalorder %s12, 1
      %p43 = por %p41, %p42
      %p44 = scmp.ne.s32.totalorder %s36, %s39
      %p45 = scmp.eq.s32.totalorder %s12, 0
      %p46 = por %p44, %p45
      %p47 = scmp.ne.s32.totalorder %s36, %s39
      %p48 = scmp.eq.s32.totalorder %s17, 1
      %p49 = por %p47, %p48
      %p50 = scmp.ne.s32.totalorder %s39, %s40
      %p51 = scmp.eq.s32.totalorder %s17, 0
      %p52 = por %p50, %p51
      %p53 = scmp.ne.s32.totalorder %s39, %s40
      %p54 = scmp.eq.s32.totalorder %s18, 1
      %p55 = por %p53, %p54
      %p57 = scmp.ne.s32.totalorder %s40, %s56
      %p58 = scmp.eq.s32.totalorder %s18, 0
      %p59 = por %p57, %p58
      %s60 = ssub.s32 %s19, %s31
      %s61 = ssub.s32 %s20, %s27
      %s62 = sor.u32 %s60, %s61
      %p63 = scmp.eq.s32.totalorder %s62, 0
      %s65 = sadd.s32 %s64, 1
      %s66 = scalar_select %p63, %s64, %s65
      %p69 = pneg %p63
      %p70 = scmp.eq.s32.totalorder %s12, 1
      %p71 = por %p69, %p70
      %p72 = scmp.ne.s32.totalorder %s64, %s67
      %p73 = scmp.eq.s32.totalorder %s12, 0
      %p74 = por %p72, %p73
      %p75 = scmp.ne.s32.totalorder %s64, %s67
      %p76 = scmp.eq.s32.totalorder %s17, 1
      %p77 = por %p75, %p76
      %p78 = scmp.ne.s32.totalorder %s67, %s68
      %p79 = scmp.eq.s32.totalorder %s17, 0
      %p80 = por %p78, %p79
      %p81 = scmp.ne.s32.totalorder %s67, %s68
      %p82 = scmp.eq.s32.totalorder %s18, 1
      %p83 = por %p81, %p82
      %p85 = scmp.ne.s32.totalorder %s68, %s84
      %p86 = scmp.eq.s32.totalorder %s18, 0
      %p87 = por %p85, %p86
      %s88 = ssub.s32 %s19, %s31
      %s89 = ssub.s32 %s20, %s27
      %s90 = sor.u32 %s88, %s89
      %p91 = scmp.eq.s32.totalorder %s90, 0
      %s93 = sadd.s32 %s92, 1
      %s94 = scalar_select %p91, %s92, %s93
      %p97 = pneg %p91
      %p98 = scmp.eq.s32.totalorder %s12, 1
      %p99 = por %p97, %p98
      %p100 = scmp.ne.s32.totalorder %s92, %s95
      %p101 = scmp.eq.s32.totalorder %s12, 0
      %p102 = por %p100, %p101
      %p103 = scmp.ne.s32.totalorder %s92, %s95
      %p104 = scmp.eq.s32.totalorder %s17, 1
      %p105 = por %p103, %p104
      %p106 = scmp.ne.s32.totalorder %s95, %s96
      %p107 = scmp.eq.s32.totalorder %s17, 0
      %p108 = por %p106, %p107
      %p109 = scmp.ne.s32.totalorder %s95, %s96
      %p110 = scmp.eq.s32.totalorder %s18, 1
      %p111 = por %p109, %p110
      %p113 = scmp.ne.s32.totalorder %s96, %s112
      %p114 = scmp.eq.s32.totalorder %s18, 0
      %p115 = por %p113, %p114
      %s116 = ssub.s32 %s19, %s31
      %p117 = scmp.eq.s32.totalorder %s116, 0
      %s119 = sadd.s32 %s118, 1
      %s120 = scalar_select %p117, %s118, %s119
      %p123 = pneg %p117
      %p124 = scmp.eq.s32.totalorder %s12, 1
      %p125 = por %p123, %p124
      %p126 = scmp.ne.s32.totalorder %s118, %s121
      %p127 = scmp.eq.s32.totalorder %s12, 0
      %p128 = por %p126, %p127
      %p129 = scmp.ne.s32.totalorder %s118, %s121
      %p130 = scmp.eq.s32.totalorder %s17, 1
      %p131 = por %p129, %p130
      %p132 = scmp.ne.s32.totalorder %s121, %s122
      %p133 = scmp.eq.s32.totalorder %s17, 0
      %p134 = por %p132, %p133
      %p135 = scmp.ne.s32.totalorder %s121, %s122
      %p136 = scmp.eq.s32.totalorder %s18, 1
      %p137 = por %p135, %p136
      %p139 = scmp.ne.s32.totalorder %s122, %s138
      %p140 = scmp.eq.s32.totalorder %s18, 0
      %p141 = por %p139, %p140
      %p142 = scmp.le.s32.totalorder 1, %s12
      %p143 = scmp.lt.s32.totalorder %s12, 3
      %p144 = pnand %p142, %p143
      %p145 = pneg %p144
      // Predicated region
      $region9: #{tpu_custom_call.1} parent=5 // pred_check
        _
      $region10: #{tpu_custom_call.1} parent=5 // pred_check_branch
        %147 = sbr.rel (%p144) target = $region12
      $region11: #{tpu_custom_call.1} parent=5 // pred_region
        %s148 = ssub.s32 %s12, 1
      $region12: #{tpu_custom_call.1} parent=5 // pred_fallthru
        _
      %p149 = scmp.lt.s32.totalorder %s12, 2
      // Predicated region
      $region13: #{tpu_custom_call.1} parent=5 // pred_check
        %p150 = pneg %p149
      $region14: #{tpu_custom_call.1} parent=5 // pred_check_branch
        %152 = sbr.rel (%p150) target = $region16
      $region15: #{tpu_custom_call.1} parent=5 // pred_region
        // Predicated region
        $region17: #{tpu_custom_call.1} parent=15 // pred_check
          %p153 = pneg %p46
        $region18: #{tpu_custom_call.1} parent=15 // pred_check_branch
          %155 = sbr.rel (%p153) target = $region20
        $region19: #{tpu_custom_call.1} parent=15 // pred_region
          %p156 = scmp.lt.s32.totalorder %s19, 1
          %s157 = scalar_select %p156, %s19, 1
          %p158 = scmp.lt.s32.totalorder %s20, 0
          %s159 = scalar_select %p158, %s20, 0
          %s160 = sadd.s32 %s159, %s157
          %s161 = smul.addr %s160, 8
          %s162 = scalar_lea.vmem %s0, %s161
        $region20: #{tpu_custom_call.1} parent=15 // pred_fallthru
          _
        // Predicated region
        $region21: #{tpu_custom_call.1} parent=15 // pred_check
          %p163 = pneg %p74
        $region22: #{tpu_custom_call.1} parent=15 // pred_check_branch
          %165 = sbr.rel (%p163) target = $region24
        $region23: #{tpu_custom_call.1} parent=15 // pred_region
          %p166 = scmp.lt.s32.totalorder %s19, 1
          %s167 = scalar_select %p166, %s19, 1
          %p168 = scmp.lt.s32.totalorder %s20, 0
          %s169 = scalar_select %p168, %s20, 0
          %s170 = sadd.s32 %s169, %s167
          %s171 = scalar_lea.vmem %s1, %s170
        $region24: #{tpu_custom_call.1} parent=15 // pred_fallthru
          _
        // Predicated region
        $region25: #{tpu_custom_call.1} parent=15 // pred_check
          %p172 = pneg %p102
        $region26: #{tpu_custom_call.1} parent=15 // pred_check_branch
          %174 = sbr.rel (%p172) target = $region28
        $region27: #{tpu_custom_call.1} parent=15 // pred_region
          %p175 = scmp.lt.s32.totalorder %s19, 1
          %s176 = scalar_select %p175, %s19, 1
          %p177 = scmp.lt.s32.totalorder %s20, 0
          %s178 = scalar_select %p177, %s20, 0
          %s179 = sadd.s32 %s178, %s176
          %s180 = smul.addr %s179, 4
          %s181 = scalar_lea.vmem %s2, %s180
        $region28: #{tpu_custom_call.1} parent=15 // pred_fallthru
          _
      $region16: #{tpu_custom_call.1} parent=5 // pred_fallthru
        _
      %p182 = scmp.le.s32.totalorder 1, %s12
      %p183 = scmp.lt.s32.totalorder %s12, 3
      %p184 = pnand %p182, %p183
      %p185 = pneg %p184
      // Predicated region
      $region29: #{tpu_custom_call.1} parent=5 // pred_check
        _
      $region30: #{tpu_custom_call.1} parent=5 // pred_check_branch
        %187 = sbr.rel (%p184) target = $region32
      $region31: #{tpu_custom_call.1} parent=5 // pred_region
        %s188 = ssub.s32 %s12, 1
        %p189 = scmp.lt.s32.totalorder %s21, 1
        %s190 = scalar_select %p189, %s21, 1
        %p191 = scmp.lt.s32.totalorder %s22, 0
        %s192 = scalar_select %p191, %s22, 0
        %s193 = sadd.s32 %s192, %s190
        %s194 = smul.addr %s193, 8
        %s195 = scalar_lea.vmem %s0, %s194
        %p196 = pneg %p52
        %p197 = pneg %p49
        %p198 = scmp.lt.s32.totalorder %s21, 1
        %s199 = scalar_select %p198, %s21, 1
        %p200 = scmp.lt.s32.totalorder %s22, 0
        %s201 = scalar_select %p200, %s22, 0
        %s202 = sadd.s32 %s201, %s199
        %s203 = scalar_lea.vmem %s1, %s202
        %p204 = pneg %p80
        %p205 = pneg %p77
        %p206 = scmp.lt.s32.totalorder %s21, 1
        %s207 = scalar_select %p206, %s21, 1
        %p208 = scmp.lt.s32.totalorder %s22, 0
        %s209 = scalar_select %p208, %s22, 0
        %s210 = sadd.s32 %s209, %s207
        %s211 = smul.addr %s210, 4
        %s212 = scalar_lea.vmem %s2, %s211
        %p213 = pneg %p108
        %p214 = pneg %p105
        %p215 = pneg %p134
        %p216 = pneg %p131
        %s217 = sand.u32 %s121, 1
        %s218 = scalar_lea.sflag [#allocation3], %s217
        %s219 = sand.u32 %s121, 1
        %s220 = smul.addr %s219, 8
        %s221 = scalar_lea.vmem [#allocation2], %s220
        %p222 = scmp.lt.s32.totalorder %s21, 1
        %s223 = scalar_select %p222, %s21, 1
        %p224 = scmp.lt.s32.totalorder %s22, 0
        %s225 = scalar_select %p224, %s22, 0
        %s226 = sadd.s32 %s225, %s223
        %s227 = smul.addr %s226, 8
        %s228 = scalar_lea.vmem %s0, %s227
        %p229 = scmp.lt.s32.totalorder %s21, 1
        %s230 = scalar_select %p229, %s21, 1
        %p231 = scmp.lt.s32.totalorder %s22, 0
        %s232 = scalar_select %p231, %s22, 0
        %s233 = sadd.s32 %s232, %s230
        %s234 = scalar_lea.vmem %s1, %s233
        %p235 = scmp.lt.s32.totalorder %s21, 1
        %s236 = scalar_select %p235, %s21, 1
        %p237 = scmp.lt.s32.totalorder %s22, 0
        %s238 = scalar_select %p237, %s22, 0
        %s239 = sadd.s32 %s238, %s236
        %s240 = smul.addr %s239, 4
        %s241 = scalar_lea.vmem %s2, %s240
        %v242 = vlaneseq
        %v243 = vand.u32 %v242, 127
        %p244 = scmp.eq.s32.totalorder %s22, 0
        // Predicated region
        $region33: #{tpu_custom_call.1} parent=31 // pred_check
          %p245 = pneg %p244
        $region34: #{tpu_custom_call.1} parent=31 // pred_check_branch
          %247 = sbr.rel (%p245) target = $region36
        $region35: #{tpu_custom_call.1} parent=31 // pred_region
          %vm248 = vcmp.ge.s32.totalorder %v243, 5
          %vm249 = vcmp.lt.s32.totalorder %v243, 9
          %vm250 = vmand %vm248, %vm249
          %v251 = vsel %vm250, inf, 0.0
          %252 = vst [vmem:[%s221] sm:$0xff] %v251
        $region36: #{tpu_custom_call.1} parent=31 // pred_fallthru
          _
        %v253 = vld [vmem:[%s228] sm:$0x1f]
        %v254 = vld [vmem:[%s234] sm:$0x1]
        %v255 = vld [vmem:[%s241] sm:$0x7]
        %v256 = vlaneseq
        %v257 = vshrl.u32 %v256, 7
        %vm258 = vcmask 1044480
        %v259 = vsel %vm258, %v253, -inf
        %v260 = vrot.slane %v259, 4
        %v261 = vmax.f32 %v259, %v260
        %v262 = vrot.slane %v261, 2
        %v263 = vmax.f32 %v261, %v262
        %v264 = vrot.slane %v263, 1
        %v265 = vmax.f32 %v263, %v264
        %vm266 = vcmp.eq.f32.partialorder %v253, %v265
        %v267 = vsel %vm266, %v257, 5
        %v268 = vsel %vm258, %v267, 2147483647
        %v269 = vrot.slane %v268, 4
        %vm270 = vcmp.lt.s32.totalorder %v268, %v269
        %v271 = vsel %vm270, %v268, %v269
        %v272 = vrot.slane %v271, 2
        %vm273 = vcmp.lt.s32.totalorder %v271, %v272
        %v274 = vsel %vm273, %v271, %v272
        %v275 = vrot.slane %v274, 1
        %vm276 = vcmp.lt.s32.totalorder %v274, %v275
        %v277 = vsel %vm276, %v274, %v275
        %v278 = vlaneseq
        %v279 = vshrl.u32 %v278, 7
        %v280 = vsub.s32 0, %v279
        %v281 = vrot.slane %v254, %v280
        %vm282 = vcmp.eq.s32.totalorder %v257, %v281
        %vm283 = vcmp.eq.s32.totalorder %v257, %v277
        %v284 = vsub.f32 %v253, %v265
        %v285 = vmul.f32 %v284, 1.442695
        %v286 = vpow.pop %v285
        %v287 = vsel %vm258, %v286, 0.0
        %v288 = vrot.slane %v287, 4
        %v289 = vadd.f32 %v287, %v288
        %v290 = vrot.slane %v289, 2
        %v291 = vadd.f32 %v289, %v290
        %v292 = vrot.slane %v291, 1
        %v293 = vadd.f32 %v291, %v292
        %v294 = vlog2.pop %v293
        %v295 = vmul.f32 %v294, 0.6931472
        %v296 = vadd.f32 %v295, %v265
        %v297 = vsel %vm282, %v253, 0.0
        %v298 = vsel %vm258, %v297, 0.0
        %v299 = vrot.slane %v298, 4
        %v300 = vadd.f32 %v298, %v299
        %v301 = vrot.slane %v300, 2
        %v302 = vadd.f32 %v300, %v301
        %v303 = vrot.slane %v302, 1
        %v304 = vadd.f32 %v302, %v303
        %v305 = vsub.f32 %v296, %v304
        %v306 = vsel %vm282, 1.0, 0.0
        %307 = vadd.xlane.f32.xlu0 %v306
        %v308 = vpop.xlane.xlu0 %307
        %v309 = vsel %vm283, 1.0, 0.0
        %310 = vadd.xlane.f32.xlu0 %v309
        %v311 = vpop.xlane.xlu0 %310
        %v312 = vlaneseq
        %v313 = vshrl.u32 %v312, 7
        %v314 = vsub.s32 2, %v313
        %v315 = vrot.slane %v255, %v314
        %v316 = vsel %vm282, %v315, 0.0
        %317 = vadd.xlane.f32.xlu0 %v316
        %v318 = vpop.xlane.xlu0 %317
        %v319 = vsel %vm283, %v315, 0.0
        %320 = vadd.xlane.f32.xlu0 %v319
        %v321 = vpop.xlane.xlu0 %320
        %v322 = vsel %vm282, %v305, 0.0
        %323 = vadd.xlane.f32.xlu0 %v322
        %v324 = vpop.xlane.xlu0 %323
        %v325 = vlaneseq
        %v326 = vshrl.u32 %v325, 7
        %v327 = vsub.s32 0, %v326
        %v328 = vrot.slane %v255, %v327
        %v329 = vsel %vm282, %v328, 10000000.0
        %330 = vmin.xlane.f32.xlu0 %v329
        %v331 = vpop.xlane.xlu0 %330
        %v332 = vlaneseq
        %v333 = vshrl.u32 %v332, 7
        %v334 = vsub.s32 1, %v333
        %v335 = vrot.slane %v255, %v334
        %v336 = vsel %vm282, %v335, 10000000.0
        %337 = vmin.xlane.f32.xlu0 %v336
        %v338 = vpop.xlane.xlu0 %337
        %v339 = vsel %vm283, %v328, 10000000.0
        %340 = vmin.xlane.f32.xlu0 %v339
        %v341 = vpop.xlane.xlu0 %340
        %v342 = vsel %vm283, %v335, 10000000.0
        %343 = vmin.xlane.f32.xlu0 %v342
        %v344 = vpop.xlane.xlu0 %343
        %v345 = vld [vmem:[%s221] sm:$0xff]
        %vm346 = vcmp.eq.s32.totalorder %v243, 0
        %v347 = vsel %vm346, %v308, 0.0
        %v348 = vadd.f32 %v345, %v347
        %vm349 = vcmp.eq.s32.totalorder %v243, 1
        %v350 = vsel %vm349, %v311, 0.0
        %v351 = vadd.f32 %v348, %v350
        %vm352 = vcmp.eq.s32.totalorder %v243, 2
        %v353 = vsel %vm352, %v318, 0.0
        %v354 = vadd.f32 %v351, %v353
        %vm355 = vcmp.eq.s32.totalorder %v243, 3
        %v356 = vsel %vm355, %v321, 0.0
        %v357 = vadd.f32 %v354, %v356
        %vm358 = vcmp.eq.s32.totalorder %v243, 4
        %v359 = vsel %vm358, %v324, 0.0
        %v360 = vadd.f32 %v357, %v359
        %vm361 = vcmp.eq.s32.totalorder %v243, 5
        %v362 = vsel %vm361, %v331, inf
        %v363 = vmin.f32 %v360, %v362
        %vm364 = vcmp.eq.s32.totalorder %v243, 6
        %v365 = vsel %vm364, %v338, inf
        %v366 = vmin.f32 %v363, %v365
        %vm367 = vcmp.eq.s32.totalorder %v243, 7
        %v368 = vsel %vm367, %v341, inf
        %v369 = vmin.f32 %v366, %v368
        %vm370 = vcmp.eq.s32.totalorder %v243, 8
        %v371 = vsel %vm370, %v344, inf
        %v372 = vmin.f32 %v369, %v371
        %373 = vst [vmem:[%s221] sm:$0xff] %v372
        %s374 = sand.u32 %s121, 1
        %s375 = scalar_lea.sflag [#allocation3], %s374
        %s376 = sand.u32 %s121, 1
        %s377 = smul.addr %s376, 8
        %s378 = scalar_lea.vmem [#allocation2], %s377
        // Predicated region
        $region37: #{tpu_custom_call.1} parent=31 // pred_check
          %p379 = pneg %p131
        $region38: #{tpu_custom_call.1} parent=31 // pred_check_branch
          %381 = sbr.rel (%p379) target = $region40
        $region39: #{tpu_custom_call.1} parent=31 // pred_region
          %s383 = ssub.s32 128, 128
          %384 = vsyncadd %s375, %s383
          %s385 = smul.addr %s21, 128
          %s386 = scalar_lea.hbm %s3, %s385
          %s388 = sshll.u32 %s378, 4
          %s389 = int_to_ptr.vmem [resolvable:$true] %s388
          %391 = dma.vmem_to_hbm [thread:$0]  %s389, 128, %s386, %s375
        $region40: #{tpu_custom_call.1} parent=31 // pred_fallthru
          _
      $region32: #{tpu_custom_call.1} parent=5 // pred_fallthru
        _
      %p392 = scmp.le.s32.totalorder 2, %s12
      // Predicated region
      $region41: #{tpu_custom_call.1} parent=5 // pred_check
        %p393 = pneg %p392
      $region42: #{tpu_custom_call.1} parent=5 // pred_check_branch
        %395 = sbr.rel (%p393) target = $region44
      $region43: #{tpu_custom_call.1} parent=5 // pred_region
        %s396 = ssub.s32 %s12, 2
        // Predicated region
        $region45: #{tpu_custom_call.1} parent=43 // pred_check
          %p397 = pneg %p137
        $region46: #{tpu_custom_call.1} parent=43 // pred_check_branch
          %399 = sbr.rel (%p397) target = $region48
        $region47: #{tpu_custom_call.1} parent=43 // pred_region
          %s400 = sand.u32 %s122, 1
          %s401 = scalar_lea.sflag [#allocation3], %s400
          %s402 = sand.u32 %s122, 1
          %s403 = smul.addr %s402, 8
          %s404 = scalar_lea.vmem [#allocation2], %s403
          %405 = dma.done %s401, 128
        $region48: #{tpu_custom_call.1} parent=43 // pred_fallthru
          _
      $region44: #{tpu_custom_call.1} parent=5 // pred_fallthru
        _
    $region6: #{tpu_custom_call.1} parent=1 // loop_footer
      %s16 = sadd.s32 1, %s12
    $region7: #{tpu_custom_call.1} parent=1 // loop_footer_branch
      %11 = sbr.rel target = $region3
    $region8: #{tpu_custom_call.1} parent=1 // loop_exit
      _
    %406 = vsyncpa [#allocation3], 1
    %s407 = scalar_lea.sflag [#allocation3], 1
    %408 = vsyncpa %s407, 1

</llo_original>
